<compile_context>
chip_gen: v5e
topology: v5e:2x2
jax: 0.10.0
libtpu: 0.0.40
codegen_flags: <defaults>
</compile_context>

<pallas_src>
import jax
import jax.numpy as jnp
from jax.experimental import pallas as pl
from jax.experimental.pallas import tpu as pltpu

EPS = 1e-5

# Whole-problem working set below this uses the single fused kernel.
_FAST_PATH_BYTES = 8 * 1024 * 1024
# Budget for double-buffered blocks in the streaming path (well under the
# 32 MiB scoped-VMEM default on every generation, incl. v7x).
_STREAM_BLOCK_BUDGET = 12 * 1024 * 1024


def _pick_hw_tile(hw_pad, cin, cout, budget_bytes=_STREAM_BLOCK_BUDGET):
    """Largest multiple-of-128 divisor of hw_pad whose double-buffered f32
    blocks (pass 1: x + y, pass 2: y + r + out) stay within budget_bytes."""
    per_col = 8 * max(cin + cout, 3 * cout)          # 2 buffers * 4 B * channels
    cap = max(128, (budget_bytes // per_col) // 128 * 128)
    n = hw_pad // 128
    best = 1
    for d in range(1, n + 1):
        if n % d == 0 and 128 * d <= cap:
            best = d
    return 128 * best


# --------------------------------------------------------------------------
# Fast path: everything VMEM-resident, one kernel launch.
# --------------------------------------------------------------------------
def _fused_single_pass(x3, w_mat, gamma3, beta3, r3):
    N, Cin, HW = x3.shape
    Cout = w_mat.shape[0]
    M_total = N * HW

    def kernel(x_ref, w_ref, g_ref, b_ref, r_ref, o_ref, y_scr):
        # 1x1 conv on the MXU, per batch image: (Cout,Cin) @ (Cin,HW).
        for n in range(N):                                   # static unroll
            y_scr[n] = jnp.dot(w_ref[...], x_ref[n],
                               preferred_element_type=jnp.float32)
        y = y_scr[...]                                       # (N, Cout, HW) f32
        inv_m = jnp.float32(1.0 / M_total)
        # Centered variance (same formulation as the reference — no E[y^2]-m^2
        # cancellation risk).
        mean = jnp.sum(jnp.sum(y, axis=2, keepdims=True), axis=0,
                       keepdims=True) * inv_m                # (1, Cout, 1)
        d = y - mean
        var = jnp.sum(jnp.sum(d * d, axis=2, keepdims=True), axis=0,
                      keepdims=True) * inv_m
        scale = g_ref[...] * jax.lax.rsqrt(var + jnp.float32(EPS))
        shift = b_ref[...] - mean * scale
        o_ref[...] = (y * scale + shift + r_ref[...]).astype(o_ref.dtype)

    return pl.pallas_call(
        kernel,
        out_shape=jax.ShapeDtypeStruct((N, Cout, HW), jnp.float32),
        grid=(1,),
        in_specs=[
            pl.BlockSpec((N, Cin, HW), lambda i: (0, 0, 0)),
            pl.BlockSpec((Cout, Cin), lambda i: (0, 0)),
            pl.BlockSpec((1, Cout, 1), lambda i: (0, 0, 0)),
            pl.BlockSpec((1, Cout, 1), lambda i: (0, 0, 0)),
            pl.BlockSpec((N, Cout, HW), lambda i: (0, 0, 0)),
        ],
        out_specs=pl.BlockSpec((N, Cout, HW), lambda i: (0, 0, 0)),
        scratch_shapes=[pltpu.VMEM((N, Cout, HW), jnp.float32)],
        compiler_params=pltpu.CompilerParams(
            dimension_semantics=("arbitrary",)),
        cost_estimate=pl.CostEstimate(
            flops=2 * M_total * Cin * Cout + 8 * M_total * Cout,
            transcendentals=Cout,
            bytes_accessed=x3.size * x3.dtype.itemsize
            + w_mat.size * w_mat.dtype.itemsize
            + 4 * (2 * M_total * Cout + 2 * Cout)),
    )(x3, w_mat, gamma3, beta3, r3)


# --------------------------------------------------------------------------
# Streaming path: conv+stats pass (y materialized once), tiny JAX combine,
# then a pure FMA + residual pass.  No second x sweep, no second matmul.
# --------------------------------------------------------------------------
def _two_pass(x3, w_mat, gamma2, beta2, r3):
    N, Cin, HW = x3.shape
    Cout = w_mat.shape[0]
    M_total = N * HW

    # Lane-dense fallback: pad spatial axis to a multiple of 128.  Zero columns
    # contribute nothing to sum/ssq; the divisor below uses the true M_total.
    HW_pad = ((HW + 127) // 128) * 128
    if HW_pad != HW:
        pad = HW_pad - HW
        x3 = jnp.pad(x3, ((0, 0), (0, 0), (0, pad)))
        r3 = jnp.pad(r3, ((0, 0), (0, 0), (0, pad)))

    thw = _pick_hw_tile(HW_pad, Cin, Cout)
    T = HW_pad // thw
    grid = (N, T)
    M_pad = N * HW_pad

    # ---- pass 1: y = W @ X (written to HBM) + per-batch partial stats -------
    def conv_stats_kernel(x_ref, w_ref, y_ref, sum_ref, ssq_ref):
        y = jnp.dot(w_ref[...], x_ref[...],
                    preferred_element_type=jnp.float32)       # (Cout, thw)
        y_ref[...] = y

        @pl.when(pl.program_id(1) == 0)
        def _():
            sum_ref[...] = jnp.zeros_like(sum_ref)
            ssq_ref[...] = jnp.zeros_like(ssq_ref)

        sum_ref[...] += jnp.sum(y, axis=1, keepdims=True)
        ssq_ref[...] += jnp.sum(y * y, axis=1, keepdims=True)

    y_full, psum, pssq = pl.pallas_call(
        conv_stats_kernel,
        out_shape=(jax.ShapeDtypeStruct((N, Cout, HW_pad), jnp.float32),
                   jax.ShapeDtypeStruct((N, Cout, 1), jnp.float32),
                   jax.ShapeDtypeStruct((N, Cout, 1), jnp.float32)),
        grid_spec=pltpu.PrefetchScalarGridSpec(
            num_scalar_prefetch=0,
            grid=grid,
            in_specs=[
                pl.BlockSpec((None, Cin, thw), lambda b, t: (b, 0, t)),
                pl.BlockSpec((Cout, Cin), lambda b, t: (0, 0)),
            ],
            out_specs=(
                pl.BlockSpec((None, Cout, thw), lambda b, t: (b, 0, t)),
                pl.BlockSpec((None, Cout, 1), lambda b, t: (b, 0, 0)),
                pl.BlockSpec((None, Cout, 1), lambda b, t: (b, 0, 0)),
            ),
        ),
        # Per-batch partial sums -> batch axis shards across TCs on v7x.
        compiler_params=pltpu.CompilerParams(
            dimension_semantics=("parallel", "arbitrary")),
        cost_estimate=pl.CostEstimate(
            flops=2 * M_pad * Cin * Cout + 3 * M_pad * Cout,
            transcendentals=0,
            bytes_accessed=x3.size * x3.dtype.itemsize
            + w_mat.size * w_mat.dtype.itemsize
            + 4 * (M_pad * Cout + 2 * N * Cout)),
    )(x3, w_mat)

    # ---- tiny cross-batch combine + BN fold (plain JAX, negligible) ---------
    tot = jnp.sum(psum, axis=0)                     # (Cout, 1)
    tot2 = jnp.sum(pssq, axis=0)
    mean = tot / M_total
    # NOTE: E[y^2]-mean^2 can cancel in f32 when |mean| >> std and M is huge;
    # clamp keeps rsqrt finite.  (The fast path uses centered variance.)
    var = jnp.maximum(tot2 / M_total - mean * mean, 0.0)
    scale = gamma2 * jax.lax.rsqrt(var + EPS)
    shift = beta2 - mean * scale

    # ---- pass 2: streaming FMA + residual add (no matmul, no x) -------------
    def norm_kernel(y_ref, s_ref, h_ref, r_ref, o_ref):
        o_ref[...] = (y_ref[...] * s_ref[...] + h_ref[...]
                      + r_ref[...]).astype(o_ref.dtype)

    out = pl.pallas_call(
        norm_kernel,
        out_shape=jax.ShapeDtypeStruct((N, Cout, HW_pad), jnp.float32),
        grid_spec=pltpu.PrefetchScalarGridSpec(
            num_scalar_prefetch=0,
            grid=grid,
            in_specs=[
                pl.BlockSpec((None, Cout, thw), lambda b, t: (b, 0, t)),
                pl.BlockSpec((Cout, 1), lambda b, t: (0, 0)),
                pl.BlockSpec((Cout, 1), lambda b, t: (0, 0)),
                pl.BlockSpec((None, Cout, thw), lambda b, t: (b, 0, t)),
            ],
            out_specs=pl.BlockSpec((None, Cout, thw), lambda b, t: (b, 0, t)),
        ),
        compiler_params=pltpu.CompilerParams(
            dimension_semantics=("parallel", "parallel")),
        cost_estimate=pl.CostEstimate(
            flops=3 * M_pad * Cout,
            transcendentals=0,
            bytes_accessed=4 * (3 * M_pad * Cout + 2 * Cout)),
    )(y_full, scale, shift, r3)

    if HW_pad != HW:
        out = out[:, :, :HW]
    return out


# --------------------------------------------------------------------------
# Public wrapper (shape-static dispatch; no NCHW<->NHWC transposes anywhere).
# --------------------------------------------------------------------------
def conv_bn_add(x57, x51, w, gamma, beta, *, matmul_dtype=None,
                force_two_pass=False):
    """x57: (N, Cin, H, W); x51: (N, Cout, H, W); w: (Cout, Cin, 1, 1)."""
    N, Cin, H, W = x57.shape
    Cout = w.shape[0]
    HW = H * W

    # Free reshapes only (contiguous NCHW).
    x3 = x57.reshape(N, Cin, HW)
    r3 = x51.reshape(N, Cout, HW).astype(jnp.float32)
    w_mat = w.reshape(Cout, Cin)
    if matmul_dtype is not None:           # e.g. jnp.bfloat16: halves x stream,
        x3 = x3.astype(matmul_dtype)       # bf16 MXU path; ~1e-3 tolerance.
        w_mat = w_mat.astype(matmul_dtype)

    itemsize = x3.dtype.itemsize
    fast_bytes = (N * Cin * HW * itemsize + Cout * Cin * itemsize
                  + 3 * 4 * N * Cout * HW + 16 * Cout)

    if (not force_two_pass) and fast_bytes <= _FAST_PATH_BYTES:
        gamma3 = gamma.reshape(1, Cout, 1).astype(jnp.float32)
        beta3 = beta.reshape(1, Cout, 1).astype(jnp.float32)
        out3 = _fused_single_pass(x3, w_mat, gamma3, beta3, r3)
    else:
        gamma2 = gamma.reshape(Cout, 1).astype(jnp.float32)
        beta2 = beta.reshape(Cout, 1).astype(jnp.float32)
        out3 = _two_pass(x3, w_mat, gamma2, beta2, r3)

    return out3.reshape(N, Cout, H, W)


def reference(x57, x51, w, gamma, beta):
    """Pure-JAX reference matching PyTorch conv2d(1x1) + training-mode BN + add."""
    Cout = w.shape[0]
    Cin = w.shape[1]
    y = jnp.einsum('oc,nchw->nohw', w.reshape(Cout, Cin), x57)
    mean = jnp.mean(y, axis=(0, 2, 3), keepdims=True)
    var = jnp.mean((y - mean) ** 2, axis=(0, 2, 3), keepdims=True)   # biased
    yn = (y - mean) / jnp.sqrt(var + EPS) * gamma.reshape(1, Cout, 1, 1) \
        + beta.reshape(1, Cout, 1, 1)
    return yn + x51


if __name__ == "__main__":
    key = jax.random.PRNGKey(0)
    k1, k2, k3, k4, k5 = jax.random.split(key, 5)

    # Shapes implied by the module: Conv2d(96->32, 1x1), BN(32),
    # x57=(1,96,28,28), x51=(1,32,28,28).
    N, Cin, Cout, H, W = 1, 96, 32, 28, 28
    x57 = jax.random.normal(k1, (N, Cin, H, W), jnp.float32)
    x51 = jax.random.normal(k2, (N, Cout, H, W), jnp.float32)
    w = jax.random.normal(k3, (Cout, Cin, 1, 1), jnp.float32) * 0.1
    gamma = 1.0 + 0.05 * jax.random.normal(k4, (Cout,), jnp.float32)
    beta = 0.05 * jax.random.normal(k5, (Cout,), jnp.float32)

    fn = jax.jit(conv_bn_add, static_argnames=("matmul_dtype", "force_two_pass"))
    ref = reference(x57, x51, w, gamma, beta)

    # 1) fused single-pass VMEM-resident path (what the module's shape takes).
    out = fn(x57, x51, w, gamma, beta)
    jax.block_until_ready(out)
    assert out.shape == (N, Cout, H, W)
    err = float(jnp.max(jnp.abs(out - ref)))
    assert jnp.allclose(out, ref, atol=1e-4, rtol=1e-4), ("fused", err)

    # 2) streaming two-pass path, exercising the pad-to-128 fallback (HW=784).
    out2 = fn(x57, x51, w, gamma, beta, force_two_pass=True)
    jax.block_until_ready(out2)
    err2 = float(jnp.max(jnp.abs(out2 - ref)))
    assert jnp.allclose(out2, ref, atol=1e-4, rtol=1e-4), ("two_pass", err2)

    # 3) streaming path on a lane-dense batch>1 shape (per-batch partial stats,
    #    megacore-friendly "parallel" batch axis).
    N2, H2, W2 = 2, 32, 32
    xb = jax.random.normal(k1, (N2, Cin, H2, W2), jnp.float32)
    rb = jax.random.normal(k2, (N2, Cout, H2, W2), jnp.float32)
    refb = reference(xb, rb, w, gamma, beta)
    outb = fn(xb, rb, w, gamma, beta, force_two_pass=True)
    jax.block_until_ready(outb)
    errb = float(jnp.max(jnp.abs(outb - refb)))
    assert jnp.allclose(outb, refb, atol=1e-4, rtol=1e-4), ("two_pass_batch", errb)

    print("KERNEL_OK")
</pallas_src>

<mosaic_0001>
module attributes {stable_mosaic.version = 11 : i64} {
  func.func @kernel(%arg0: i32, %arg1: memref<1x96x784xf32, #tpu.memory_space<vmem>>, %arg2: memref<32x96xf32, #tpu.memory_space<vmem>>, %arg3: memref<1x32x1xf32, #tpu.memory_space<vmem>>, %arg4: memref<1x32x1xf32, #tpu.memory_space<vmem>>, %arg5: memref<1x32x784xf32, #tpu.memory_space<vmem>>, %arg6: memref<1x32x784xf32, #tpu.memory_space<vmem>>, %arg7: memref<1x32x784xf32, #tpu.memory_space<vmem>>) attributes {dimension_semantics = [#tpu.dimension_semantics<arbitrary>], iteration_bounds = array<i64: 1>, scalar_prefetch = 0 : i64, scratch_operands = 1 : i64, tpu.core_type = #tpu.core_type<tc>, window_params = [{pipeline_mode = #tpu.pipeline_mode<synchronous>, transform_indices = @transform_0, window_bounds = array<i64: 1, 96, 784>}, {pipeline_mode = #tpu.pipeline_mode<synchronous>, transform_indices = @transform_1, window_bounds = array<i64: 32, 96>}, {pipeline_mode = #tpu.pipeline_mode<synchronous>, transform_indices = @transform_2, window_bounds = array<i64: 1, 32, 1>}, {pipeline_mode = #tpu.pipeline_mode<synchronous>, transform_indices = @transform_3, window_bounds = array<i64: 1, 32, 1>}, {pipeline_mode = #tpu.pipeline_mode<synchronous>, transform_indices = @transform_4, window_bounds = array<i64: 1, 32, 784>}, {pipeline_mode = #tpu.pipeline_mode<synchronous>, transform_indices = @transform_5, window_bounds = array<i64: 1, 32, 784>}]} {
    %c0 = arith.constant 0 : index
    %c0_0 = arith.constant 0 : index
    %0 = vector.load %arg2[%c0, %c0_0] : memref<32x96xf32, #tpu.memory_space<vmem>>, vector<32x96xf32>
    %c0_1 = arith.constant 0 : index
    %c0_2 = arith.constant 0 : index
    %c0_3 = arith.constant 0 : index
    %1 = vector.load %arg1[%c0_1, %c0_2, %c0_3] : memref<1x96x784xf32, #tpu.memory_space<vmem>>, vector<1x96x784xf32>
    %2 = vector.shape_cast %1 : vector<1x96x784xf32> to vector<96x784xf32>
    %cst = arith.constant dense<0.000000e+00> : vector<32x784xf32>
    %3 = tpu.matmul %0, %2, %cst {dimension_numbers = #tpu.dot_dimension_numbers<[1], [0], [0], [1], [0, 0, 1, 1], [], []>} : vector<32x96xf32>, vector<96x784xf32>, vector<32x784xf32> -> vector<32x784xf32>
    %c0_4 = arith.constant 0 : index
    %c0_5 = arith.constant 0 : index
    %c0_6 = arith.constant 0 : index
    %4 = vector.load %arg7[%c0_4, %c0_5, %c0_6] : memref<1x32x784xf32, #tpu.memory_space<vmem>>, vector<1x32x784xf32>
    %5 = vector.shape_cast %4 : vector<1x32x784xf32> to vector<32x784xf32>
    %6 = vector.shape_cast %3 : vector<32x784xf32> to vector<1x32x784xf32>
    tpu.vector_store %arg7[%c0_4, %c0_5, %c0_6], %6 {strides = array<i32>} : memref<1x32x784xf32, #tpu.memory_space<vmem>>, vector<1x32x784xf32>,
    %c0_7 = arith.constant 0 : index
    %c0_8 = arith.constant 0 : index
    %c0_9 = arith.constant 0 : index
    %7 = vector.load %arg7[%c0_7, %c0_8, %c0_9] : memref<1x32x784xf32, #tpu.memory_space<vmem>>, vector<1x32x784xf32>
    %cst_10 = arith.constant dense<0.000000e+00> : vector<1x32xf32>
    %8 = vector.multi_reduction <add>, %7, %cst_10 [2] : vector<1x32x784xf32> to vector<1x32xf32>
    %9 = vector.shape_cast %8 : vector<1x32xf32> to vector<1x32x1xf32>
    %cst_11 = arith.constant dense<0.000000e+00> : vector<32x1xf32>
    %10 = vector.multi_reduction <add>, %9, %cst_11 [0] : vector<1x32x1xf32> to vector<32x1xf32>
    %11 = vector.shape_cast %10 : vector<32x1xf32> to vector<1x32x1xf32>
    %cst_12 = arith.constant 0.00127551018 : f32
    %12 = vector.broadcast %cst_12 : f32 to vector<1x32x1xf32>
    %13 = arith.mulf %11, %12 : vector<1x32x1xf32>
    %14 = vector.broadcast %13 : vector<1x32x1xf32> to vector<1x32x784xf32>
    %15 = arith.subf %7, %14 : vector<1x32x784xf32>
    %16 = arith.mulf %15, %15 : vector<1x32x784xf32>
    %cst_13 = arith.constant dense<0.000000e+00> : vector<1x32xf32>
    %17 = vector.multi_reduction <add>, %16, %cst_13 [2] : vector<1x32x784xf32> to vector<1x32xf32>
    %18 = vector.shape_cast %17 : vector<1x32xf32> to vector<1x32x1xf32>
    %cst_14 = arith.constant dense<0.000000e+00> : vector<32x1xf32>
    %19 = vector.multi_reduction <add>, %18, %cst_14 [0] : vector<1x32x1xf32> to vector<32x1xf32>
    %20 = vector.shape_cast %19 : vector<32x1xf32> to vector<1x32x1xf32>
    %cst_15 = arith.constant 0.00127551018 : f32
    %21 = vector.broadcast %cst_15 : f32 to vector<1x32x1xf32>
    %22 = arith.mulf %20, %21 : vector<1x32x1xf32>
    %c0_16 = arith.constant 0 : index
    %c0_17 = arith.constant 0 : index
    %c0_18 = arith.constant 0 : index
    %23 = vector.load %arg3[%c0_16, %c0_17, %c0_18] : memref<1x32x1xf32, #tpu.memory_space<vmem>>, vector<1x32x1xf32>
    %cst_19 = arith.constant 9.99999974E-6 : f32
    %24 = vector.broadcast %cst_19 : f32 to vector<1x32x1xf32>
    %25 = arith.addf %22, %24 : vector<1x32x1xf32>
    %26 = math.rsqrt %25 : vector<1x32x1xf32>
    %27 = arith.mulf %23, %26 : vector<1x32x1xf32>
    %c0_20 = arith.constant 0 : index
    %c0_21 = arith.constant 0 : index
    %c0_22 = arith.constant 0 : index
    %28 = vector.load %arg4[%c0_20, %c0_21, %c0_22] : memref<1x32x1xf32, #tpu.memory_space<vmem>>, vector<1x32x1xf32>
    %29 = arith.mulf %13, %27 : vector<1x32x1xf32>
    %30 = arith.subf %28, %29 : vector<1x32x1xf32>
    %31 = vector.broadcast %27 : vector<1x32x1xf32> to vector<1x32x784xf32>
    %32 = arith.mulf %7, %31 : vector<1x32x784xf32>
    %33 = vector.broadcast %30 : vector<1x32x1xf32> to vector<1x32x784xf32>
    %34 = arith.addf %32, %33 : vector<1x32x784xf32>
    %c0_23 = arith.constant 0 : index
    %c0_24 = arith.constant 0 : index
    %c0_25 = arith.constant 0 : index
    %35 = vector.load %arg5[%c0_23, %c0_24, %c0_25] : memref<1x32x784xf32, #tpu.memory_space<vmem>>, vector<1x32x784xf32>
    %36 = arith.addf %34, %35 : vector<1x32x784xf32>
    %c0_26 = arith.constant 0 : index
    %c0_27 = arith.constant 0 : index
    %c0_28 = arith.constant 0 : index
    %37 = vector.load %arg6[%c0_26, %c0_27, %c0_28] : memref<1x32x784xf32, #tpu.memory_space<vmem>>, vector<1x32x784xf32>
    tpu.vector_store %arg6[%c0_26, %c0_27, %c0_28], %36 {strides = array<i32>} : memref<1x32x784xf32, #tpu.memory_space<vmem>>, vector<1x32x784xf32>,
    return
  }
  func.func @transform_0(%arg0: i32) -> (i32, i32, i32) {
    %c0_i32 = arith.constant 0 : i32
    %c0_i32_0 = arith.constant 0 : i32
    %c0_i32_1 = arith.constant 0 : i32
    %c0_i32_2 = arith.constant 0 : i32
    return %c0_i32, %c0_i32_0, %c0_i32_1 : i32, i32, i32
  }
  func.func @transform_1(%arg0: i32) -> (i32, i32) {
    %c0_i32 = arith.constant 0 : i32
    %c0_i32_0 = arith.constant 0 : i32
    %c0_i32_1 = arith.constant 0 : i32
    return %c0_i32, %c0_i32_0 : i32, i32
  }
  func.func @transform_2(%arg0: i32) -> (i32, i32, i32) {
    %c0_i32 = arith.constant 0 : i32
    %c0_i32_0 = arith.constant 0 : i32
    %c0_i32_1 = arith.constant 0 : i32
    %c0_i32_2 = arith.constant 0 : i32
    return %c0_i32, %c0_i32_0, %c0_i32_1 : i32, i32, i32
  }
  func.func @transform_3(%arg0: i32) -> (i32, i32, i32) {
    %c0_i32 = arith.constant 0 : i32
    %c0_i32_0 = arith.constant 0 : i32
    %c0_i32_1 = arith.constant 0 : i32
    %c0_i32_2 = arith.constant 0 : i32
    return %c0_i32, %c0_i32_0, %c0_i32_1 : i32, i32, i32
  }
  func.func @transform_4(%arg0: i32) -> (i32, i32, i32) {
    %c0_i32 = arith.constant 0 : i32
    %c0_i32_0 = arith.constant 0 : i32
    %c0_i32_1 = arith.constant 0 : i32
    %c0_i32_2 = arith.constant 0 : i32
    return %c0_i32, %c0_i32_0, %c0_i32_1 : i32, i32, i32
  }
  func.func @transform_5(%arg0: i32) -> (i32, i32, i32) {
    %c0_i32 = arith.constant 0 : i32
    %c0_i32_0 = arith.constant 0 : i32
    %c0_i32_1 = arith.constant 0 : i32
    %c0_i32_2 = arith.constant 0 : i32
    return %c0_i32, %c0_i32_0, %c0_i32_1 : i32, i32, i32
  }
}

</mosaic_0001>

<llo_original>
// kernel: conv_bn_add.1
$region0: #{conv_bn_add.1}
  #allocation0 [shape = 'u32[]', space=smem, size = 0x4, offset = 0x4, fixed_abs, tag = 'smem constant byte address 0x4 - core index']
  #allocation1 [shape = 'u32[72,128]{1,0:T(1,128)}', space=vmem, size = 0x9000, scoped, tag = 'internal scratch']
  #allocation2 [shape = 'f32[1,32,784]{2,1,0:T(8,128)}', space=vmem, size = 0x1c000, scoped, tag = 'scratch operand']
  %s0 = inlined_call_operand.vmem [shape: f32[1,96,784], index: 0, kind: input, shape index: {}]
  %s1 = inlined_call_operand.vmem [shape: f32[32,96], index: 1, kind: input, shape index: {}]
  %s2 = inlined_call_operand.vmem [shape: f32[1,32,1], index: 2, kind: input, shape index: {}]
  %s3 = inlined_call_operand.vmem [shape: f32[1,32,1], index: 3, kind: input, shape index: {}]
  %s4 = inlined_call_operand.vmem [shape: f32[1,32,784], index: 4, kind: input, shape index: {}]
  %s5 = inlined_call_operand.vmem [shape: f32[1,32,784], index: 5, kind: output, shape index: {}]
  %s6 = sld [smem:[#allocation0]]
  $region30: #{conv_bn_add.1} parent=0
    _
  %s8 = ssub.s32 1, %s6
  %s9 = scalar_select 0, %s8, %s6
  // Predicated region
  $region2: #{conv_bn_add.1} parent=0 // pred_check
    _
  $region3: #{conv_bn_add.1} parent=0 // pred_check_branch
    %11 = sbr.rel (0) target = $region5
  $region4: #{conv_bn_add.1} parent=0 // pred_region
    _
  $region5: #{conv_bn_add.1} parent=0 // pred_fallthru
    _
  // Predicated region
  $region6: #{conv_bn_add.1} parent=0 // pred_check
    _
  $region7: #{conv_bn_add.1} parent=0 // pred_check_branch
    %13 = sbr.rel (0) target = $region9
  $region8: #{conv_bn_add.1} parent=0 // pred_region
    _
  $region9: #{conv_bn_add.1} parent=0 // pred_fallthru
    _
  // Predicated region
  $region10: #{conv_bn_add.1} parent=0 // pred_check
    _
  $region11: #{conv_bn_add.1} parent=0 // pred_check_branch
    %15 = sbr.rel (0) target = $region13
  $region12: #{conv_bn_add.1} parent=0 // pred_region
    _
  $region13: #{conv_bn_add.1} parent=0 // pred_fallthru
    _
  // Predicated region
  $region14: #{conv_bn_add.1} parent=0 // pred_check
    _
  $region15: #{conv_bn_add.1} parent=0 // pred_check_branch
    %17 = sbr.rel (0) target = $region17
  $region16: #{conv_bn_add.1} parent=0 // pred_region
    _
  $region17: #{conv_bn_add.1} parent=0 // pred_fallthru
    _
  // Predicated region
  $region18: #{conv_bn_add.1} parent=0 // pred_check
    _
  $region19: #{conv_bn_add.1} parent=0 // pred_check_branch
    %19 = sbr.rel (0) target = $region21
  $region20: #{conv_bn_add.1} parent=0 // pred_region
    _
  $region21: #{conv_bn_add.1} parent=0 // pred_fallthru
    _
  %v20 = vld [vmem:[%s1] sm:$0xff]
  %v21 = vld [vmem:[%s1 + $0x8] sm:$0xff]
  %v22 = vld [vmem:[%s1 + $0x10] sm:$0xff]
  %v23 = vld [vmem:[%s1 + $0x18] sm:$0xff]
  %v24 = vld [vmem:[%s0] sm:$0xff]
  %v25 = vld [vmem:[%s0 + $0x8] sm:$0xff]
  %v26 = vld [vmem:[%s0 + $0x10] sm:$0xff]
  %v27 = vld [vmem:[%s0 + $0x18] sm:$0xff]
  %v28 = vld [vmem:[%s0 + $0x20] sm:$0xff]
  %v29 = vld [vmem:[%s0 + $0x28] sm:$0xff]
  %v30 = vld [vmem:[%s0 + $0x30] sm:$0xff]
  %v31 = vld [vmem:[%s0 + $0x38] sm:$0xff]
  %v32 = vld [vmem:[%s0 + $0x40] sm:$0xff]
  %v33 = vld [vmem:[%s0 + $0x48] sm:$0xff]
  %v34 = vld [vmem:[%s0 + $0x50] sm:$0xff]
  %v35 = vld [vmem:[%s0 + $0x58] sm:$0xff]
  %v36 = vld [vmem:[%s0 + $0x60] sm:$0xff]
  %v37 = vld [vmem:[%s0 + $0x68] sm:$0xff]
  %v38 = vld [vmem:[%s0 + $0x70] sm:$0xff]
  %v39 = vld [vmem:[%s0 + $0x78] sm:$0xff]
  %v40 = vld [vmem:[%s0 + $0x80] sm:$0xff]
  %v41 = vld [vmem:[%s0 + $0x88] sm:$0xff]
  %v42 = vld [vmem:[%s0 + $0x90] sm:$0xff]
  %v43 = vld [vmem:[%s0 + $0x98] sm:$0xff]
  %v44 = vld [vmem:[%s0 + $0xa0] sm:$0xff]
  %v45 = vld [vmem:[%s0 + $0xa8] sm:$0xff]
  %v46 = vld [vmem:[%s0 + $0xb0] sm:$0xff]
  %v47 = vld [vmem:[%s0 + $0xb8] sm:$0xff]
  %v48 = vld [vmem:[%s0 + $0xc0] sm:$0xff]
  %v49 = vld [vmem:[%s0 + $0xc8] sm:$0xff]
  %v50 = vld [vmem:[%s0 + $0xd0] sm:$0xff]
  %v51 = vld [vmem:[%s0 + $0xd8] sm:$0xff]
  %v52 = vld [vmem:[%s0 + $0xe0] sm:$0xff]
  %v53 = vld [vmem:[%s0 + $0xe8] sm:$0xff]
  %v54 = vld [vmem:[%s0 + $0xf0] sm:$0xff]
  %v55 = vld [vmem:[%s0 + $0xf8] sm:$0xff]
  %v56 = vld [vmem:[%s0 + $0x100] sm:$0xff]
  %v57 = vld [vmem:[%s0 + $0x108] sm:$0xff]
  %v58 = vld [vmem:[%s0 + $0x110] sm:$0xff]
  %v59 = vld [vmem:[%s0 + $0x118] sm:$0xff]
  %v60 = vld [vmem:[%s0 + $0x120] sm:$0xff]
  %v61 = vld [vmem:[%s0 + $0x128] sm:$0xff]
  %v62 = vld [vmem:[%s0 + $0x130] sm:$0xff]
  %v63 = vld [vmem:[%s0 + $0x138] sm:$0xff]
  %v64 = vld [vmem:[%s0 + $0x140] sm:$0xff]
  %v65 = vld [vmem:[%s0 + $0x148] sm:$0xff]
  %v66 = vld [vmem:[%s0 + $0x150] sm:$0xff]
  %v67 = vld [vmem:[%s0 + $0x158] sm:$0xff]
  %v68 = vld [vmem:[%s0 + $0x160] sm:$0xff]
  %v69 = vld [vmem:[%s0 + $0x168] sm:$0xff]
  %v70 = vld [vmem:[%s0 + $0x170] sm:$0xff]
  %v71 = vld [vmem:[%s0 + $0x178] sm:$0xff]
  %v72 = vld [vmem:[%s0 + $0x180] sm:$0xff]
  %v73 = vld [vmem:[%s0 + $0x188] sm:$0xff]
  %v74 = vld [vmem:[%s0 + $0x190] sm:$0xff]
  %v75 = vld [vmem:[%s0 + $0x198] sm:$0xff]
  %v76 = vld [vmem:[%s0 + $0x1a0] sm:$0xff]
  %v77 = vld [vmem:[%s0 + $0x1a8] sm:$0xff]
  %v78 = vld [vmem:[%s0 + $0x1b0] sm:$0xff]
  %v79 = vld [vmem:[%s0 + $0x1b8] sm:$0xff]
  %v80 = vld [vmem:[%s0 + $0x1c0] sm:$0xff]
  %v81 = vld [vmem:[%s0 + $0x1c8] sm:$0xff]
  %v82 = vld [vmem:[%s0 + $0x1d0] sm:$0xff]
  %v83 = vld [vmem:[%s0 + $0x1d8] sm:$0xff]
  %v84 = vld [vmem:[%s0 + $0x1e0] sm:$0xff]
  %v85 = vld [vmem:[%s0 + $0x1e8] sm:$0xff]
  %v86 = vld [vmem:[%s0 + $0x1f0] sm:$0xff]
  %v87 = vld [vmem:[%s0 + $0x1f8] sm:$0xff]
  %v88 = vld [vmem:[%s0 + $0x200] sm:$0xff]
  %v89 = vld [vmem:[%s0 + $0x208] sm:$0xff]
  %v90 = vld [vmem:[%s0 + $0x210] sm:$0xff]
  %v91 = vld [vmem:[%s0 + $0x218] sm:$0xff]
  %v92 = vld [vmem:[%s0 + $0x220] sm:$0xff]
  %v93 = vld [vmem:[%s0 + $0x228] sm:$0xff]
  %v94 = vld [vmem:[%s0 + $0x230] sm:$0xff]
  %v95 = vld [vmem:[%s0 + $0x238] sm:$0xff]
  %v96 = vld [vmem:[%s0 + $0x240] sm:$0xff]
  %v97 = vld [vmem:[%s0 + $0x248] sm:$0xff]
  %v98 = vld [vmem:[%s0 + $0x250] sm:$0xff]
  %v99 = vld [vmem:[%s0 + $0x258] sm:$0xff]
  %v100 = vld [vmem:[%s0 + $0x260] sm:$0xff]
  %v101 = vld [vmem:[%s0 + $0x268] sm:$0xff]
  %v102 = vld [vmem:[%s0 + $0x270] sm:$0xff]
  %v103 = vld [vmem:[%s0 + $0x278] sm:$0xff]
  %v104 = vld [vmem:[%s0 + $0x280] sm:$0xff]
  %v105 = vld [vmem:[%s0 + $0x288] sm:$0xff]
  %v106 = vld [vmem:[%s0 + $0x290] sm:$0xff]
  %v107 = vld [vmem:[%s0 + $0x298] sm:$0xff]
  %vm108 = vcmask 785408
  %v110 = vsel %vm108, %v20, 0
  %v113 = vsel %vm108, %v21, 0
  %v116 = vsel %vm108, %v22, 0
  %v119 = vsel %vm108, %v23, 0
  %121 = vmatpush.msra.mxu0 0.0
  %122 = vmatpush.msra.mxu0 0.0
  %123 = vmatpush.msra.mxu0 0.0
  %124 = vmatpush.msra.mxu0 0.0
  %125 = vmatpush.msra.mxu0 %v101
  %126 = vmatpush.msra.mxu0 %v94
  %127 = vmatpush.msra.mxu0 %v87
  %128 = vmatpush.msra.mxu0 %v80
  %129 = vmatpush.msra.mxu0 %v73
  %130 = vmatpush.msra.mxu0 %v66
  %131 = vmatpush.msra.mxu0 %v59
  %132 = vmatpush.msra.mxu0 %v52
  %133 = vmatpush.msra.mxu0 %v45
  %134 = vmatpush.msra.mxu0 %v38
  %135 = vmatpush.msra.mxu0 %v31
  %136 = vmatpush.msra.mxu0 %v24
  %137 = vmatmul.f32.gmra.mxu0 %v110
  %v138 = vpop.f32.mrf.mxu0
  %v139 = vadd.f32 0.0, %v138
  %140 = vmatmul.f32.gmra.mxu0 %v113
  %v141 = vpop.f32.mrf.mxu0
  %v142 = vadd.f32 0.0, %v141
  %143 = vmatmul.f32.gmra.mxu0 %v116
  %v144 = vpop.f32.mrf.mxu0
  %v145 = vadd.f32 0.0, %v144
  %146 = vmatmul.f32.gmra.mxu0 %v119
  %v147 = vpop.f32.mrf.mxu0
  %v148 = vadd.f32 0.0, %v147
  %149 = vdwg.mxu0
  %150 = vmatpush.msra.mxu0 0.0
  %151 = vmatpush.msra.mxu0 0.0
  %152 = vmatpush.msra.mxu0 0.0
  %153 = vmatpush.msra.mxu0 0.0
  %154 = vmatpush.msra.mxu0 %v102
  %155 = vmatpush.msra.mxu0 %v95
  %156 = vmatpush.msra.mxu0 %v88
  %157 = vmatpush.msra.mxu0 %v81
  %158 = vmatpush.msra.mxu0 %v74
  %159 = vmatpush.msra.mxu0 %v67
  %160 = vmatpush.msra.mxu0 %v60
  %161 = vmatpush.msra.mxu0 %v53
  %162 = vmatpush.msra.mxu0 %v46
  %163 = vmatpush.msra.mxu0 %v39
  %164 = vmatpush.msra.mxu0 %v32
  %165 = vmatpush.msra.mxu0 %v25
  %166 = vmatmul.f32.gmra.mxu0 %v110
  %v167 = vpop.f32.mrf.mxu0
  %v168 = vadd.f32 0.0, %v167
  %169 = vmatmul.f32.gmra.mxu0 %v113
  %v170 = vpop.f32.mrf.mxu0
  %v171 = vadd.f32 0.0, %v170
  %172 = vmatmul.f32.gmra.mxu0 %v116
  %v173 = vpop.f32.mrf.mxu0
  %v174 = vadd.f32 0.0, %v173
  %175 = vmatmul.f32.gmra.mxu0 %v119
  %v176 = vpop.f32.mrf.mxu0
  %v177 = vadd.f32 0.0, %v176
  %178 = vdwg.mxu0
  %179 = vmatpush.msra.mxu0 0.0
  %180 = vmatpush.msra.mxu0 0.0
  %181 = vmatpush.msra.mxu0 0.0
  %182 = vmatpush.msra.mxu0 0.0
  %183 = vmatpush.msra.mxu0 %v103
  %184 = vmatpush.msra.mxu0 %v96
  %185 = vmatpush.msra.mxu0 %v89
  %186 = vmatpush.msra.mxu0 %v82
  %187 = vmatpush.msra.mxu0 %v75
  %188 = vmatpush.msra.mxu0 %v68
  %189 = vmatpush.msra.mxu0 %v61
  %190 = vmatpush.msra.mxu0 %v54
  %191 = vmatpush.msra.mxu0 %v47
  %192 = vmatpush.msra.mxu0 %v40
  %193 = vmatpush.msra.mxu0 %v33
  %194 = vmatpush.msra.mxu0 %v26
  %195 = vmatmul.f32.gmra.mxu0 %v110
  %v196 = vpop.f32.mrf.mxu0
  %v197 = vadd.f32 0.0, %v196
  %198 = vmatmul.f32.gmra.mxu0 %v113
  %v199 = vpop.f32.mrf.mxu0
  %v200 = vadd.f32 0.0, %v199
  %201 = vmatmul.f32.gmra.mxu0 %v116
  %v202 = vpop.f32.mrf.mxu0
  %v203 = vadd.f32 0.0, %v202
  %204 = vmatmul.f32.gmra.mxu0 %v119
  %v205 = vpop.f32.mrf.mxu0
  %v206 = vadd.f32 0.0, %v205
  %207 = vdwg.mxu0
  %208 = vmatpush.msra.mxu0 0.0
  %209 = vmatpush.msra.mxu0 0.0
  %210 = vmatpush.msra.mxu0 0.0
  %211 = vmatpush.msra.mxu0 0.0
  %212 = vmatpush.msra.mxu0 %v104
  %213 = vmatpush.msra.mxu0 %v97
  %214 = vmatpush.msra.mxu0 %v90
  %215 = vmatpush.msra.mxu0 %v83
  %216 = vmatpush.msra.mxu0 %v76
  %217 = vmatpush.msra.mxu0 %v69
  %218 = vmatpush.msra.mxu0 %v62
  %219 = vmatpush.msra.mxu0 %v55
  %220 = vmatpush.msra.mxu0 %v48
  %221 = vmatpush.msra.mxu0 %v41
  %222 = vmatpush.msra.mxu0 %v34
  %223 = vmatpush.msra.mxu0 %v27
  %224 = vmatmul.f32.gmra.mxu0 %v110
  %v225 = vpop.f32.mrf.mxu0
  %v226 = vadd.f32 0.0, %v225
  %227 = vmatmul.f32.gmra.mxu0 %v113
  %v228 = vpop.f32.mrf.mxu0
  %v229 = vadd.f32 0.0, %v228
  %230 = vmatmul.f32.gmra.mxu0 %v116
  %v231 = vpop.f32.mrf.mxu0
  %v232 = vadd.f32 0.0, %v231
  %233 = vmatmul.f32.gmra.mxu0 %v119
  %v234 = vpop.f32.mrf.mxu0
  %v235 = vadd.f32 0.0, %v234
  %236 = vdwg.mxu0
  %237 = vmatpush.msra.mxu0 0.0
  %238 = vmatpush.msra.mxu0 0.0
  %239 = vmatpush.msra.mxu0 0.0
  %240 = vmatpush.msra.mxu0 0.0
  %241 = vmatpush.msra.mxu0 %v105
  %242 = vmatpush.msra.mxu0 %v98
  %243 = vmatpush.msra.mxu0 %v91
  %244 = vmatpush.msra.mxu0 %v84
  %245 = vmatpush.msra.mxu0 %v77
  %246 = vmatpush.msra.mxu0 %v70
  %247 = vmatpush.msra.mxu0 %v63
  %248 = vmatpush.msra.mxu0 %v56
  %249 = vmatpush.msra.mxu0 %v49
  %250 = vmatpush.msra.mxu0 %v42
  %251 = vmatpush.msra.mxu0 %v35
  %252 = vmatpush.msra.mxu0 %v28
  %253 = vmatmul.f32.gmra.mxu0 %v110
  %v254 = vpop.f32.mrf.mxu0
  %v255 = vadd.f32 0.0, %v254
  %256 = vmatmul.f32.gmra.mxu0 %v113
  %v257 = vpop.f32.mrf.mxu0
  %v258 = vadd.f32 0.0, %v257
  %259 = vmatmul.f32.gmra.mxu0 %v116
  %v260 = vpop.f32.mrf.mxu0
  %v261 = vadd.f32 0.0, %v260
  %262 = vmatmul.f32.gmra.mxu0 %v119
  %v263 = vpop.f32.mrf.mxu0
  %v264 = vadd.f32 0.0, %v263
  %265 = vdwg.mxu0
  %266 = vmatpush.msra.mxu0 0.0
  %267 = vmatpush.msra.mxu0 0.0
  %268 = vmatpush.msra.mxu0 0.0
  %269 = vmatpush.msra.mxu0 0.0
  %270 = vmatpush.msra.mxu0 %v106
  %271 = vmatpush.msra.mxu0 %v99
  %272 = vmatpush.msra.mxu0 %v92
  %273 = vmatpush.msra.mxu0 %v85
  %274 = vmatpush.msra.mxu0 %v78
  %275 = vmatpush.msra.mxu0 %v71
  %276 = vmatpush.msra.mxu0 %v64
  %277 = vmatpush.msra.mxu0 %v57
  %278 = vmatpush.msra.mxu0 %v50
  %279 = vmatpush.msra.mxu0 %v43
  %280 = vmatpush.msra.mxu0 %v36
  %281 = vmatpush.msra.mxu0 %v29
  %282 = vmatmul.f32.gmra.mxu0 %v110
  %v283 = vpop.f32.mrf.mxu0
  %v284 = vadd.f32 0.0, %v283
  %285 = vmatmul.f32.gmra.mxu0 %v113
  %v286 = vpop.f32.mrf.mxu0
  %v287 = vadd.f32 0.0, %v286
  %288 = vmatmul.f32.gmra.mxu0 %v116
  %v289 = vpop.f32.mrf.mxu0
  %v290 = vadd.f32 0.0, %v289
  %291 = vmatmul.f32.gmra.mxu0 %v119
  %v292 = vpop.f32.mrf.mxu0
  %v293 = vadd.f32 0.0, %v292
  %294 = vdwg.mxu0
  %295 = vmatpush.msra.mxu0 0.0
  %296 = vmatpush.msra.mxu0 0.0
  %297 = vmatpush.msra.mxu0 0.0
  %298 = vmatpush.msra.mxu0 0.0
  %299 = vmatpush.msra.mxu0 %v107
  %300 = vmatpush.msra.mxu0 %v100
  %301 = vmatpush.msra.mxu0 %v93
  %302 = vmatpush.msra.mxu0 %v86
  %303 = vmatpush.msra.mxu0 %v79
  %304 = vmatpush.msra.mxu0 %v72
  %305 = vmatpush.msra.mxu0 %v65
  %306 = vmatpush.msra.mxu0 %v58
  %307 = vmatpush.msra.mxu0 %v51
  %308 = vmatpush.msra.mxu0 %v44
  %309 = vmatpush.msra.mxu0 %v37
  %310 = vmatpush.msra.mxu0 %v30
  %311 = vmatmul.f32.gmra.mxu0 %v110
  %v312 = vpop.f32.mrf.mxu0
  %v313 = vadd.f32 0.0, %v312
  %314 = vmatmul.f32.gmra.mxu0 %v113
  %v315 = vpop.f32.mrf.mxu0
  %v316 = vadd.f32 0.0, %v315
  %317 = vmatmul.f32.gmra.mxu0 %v116
  %v318 = vpop.f32.mrf.mxu0
  %v319 = vadd.f32 0.0, %v318
  %320 = vmatmul.f32.gmra.mxu0 %v119
  %v321 = vpop.f32.mrf.mxu0
  %v322 = vadd.f32 0.0, %v321
  %323 = vdwg.mxu0
  %324 = vst [vmem:[#allocation2] sm:$0xff] %v139
  %325 = vst [vmem:[#allocation2 + $0x8] sm:$0xff] %v168
  %326 = vst [vmem:[#allocation2 + $0x10] sm:$0xff] %v197
  %327 = vst [vmem:[#allocation2 + $0x18] sm:$0xff] %v226
  %328 = vst [vmem:[#allocation2 + $0x20] sm:$0xff] %v255
  %329 = vst [vmem:[#allocation2 + $0x28] sm:$0xff] %v284
  %vm330 = vcmask 130048
  %331 = vst.msk [vmem:[#allocation2 + $0x30] sm:$0xff] %vm330, %v313
  %332 = vst [vmem:[#allocation2 + $0x38] sm:$0xff] %v142
  %333 = vst [vmem:[#allocation2 + $0x40] sm:$0xff] %v171
  %334 = vst [vmem:[#allocation2 + $0x48] sm:$0xff] %v200
  %335 = vst [vmem:[#allocation2 + $0x50] sm:$0xff] %v229
  %336 = vst [vmem:[#allocation2 + $0x58] sm:$0xff] %v258
  %337 = vst [vmem:[#allocation2 + $0x60] sm:$0xff] %v287
  %338 = vst.msk [vmem:[#allocation2 + $0x68] sm:$0xff] %vm330, %v316
  %339 = vst [vmem:[#allocation2 + $0x70] sm:$0xff] %v145
  %340 = vst [vmem:[#allocation2 + $0x78] sm:$0xff] %v174
  %341 = vst [vmem:[#allocation2 + $0x80] sm:$0xff] %v203
  %342 = vst [vmem:[#allocation2 + $0x88] sm:$0xff] %v232
  %343 = vst [vmem:[#allocation2 + $0x90] sm:$0xff] %v261
  %344 = vst [vmem:[#allocation2 + $0x98] sm:$0xff] %v290
  %345 = vst.msk [vmem:[#allocation2 + $0xa0] sm:$0xff] %vm330, %v319
  %346 = vst [vmem:[#allocation2 + $0xa8] sm:$0xff] %v148
  %347 = vst [vmem:[#allocation2 + $0xb0] sm:$0xff] %v177
  %348 = vst [vmem:[#allocation2 + $0xb8] sm:$0xff] %v206
  %349 = vst [vmem:[#allocation2 + $0xc0] sm:$0xff] %v235
  %350 = vst [vmem:[#allocation2 + $0xc8] sm:$0xff] %v264
  %351 = vst [vmem:[#allocation2 + $0xd0] sm:$0xff] %v293
  %352 = vst.msk [vmem:[#allocation2 + $0xd8] sm:$0xff] %vm330, %v322
  %v353 = vld [vmem:[#allocation2] sm:$0xff]
  %v354 = vld [vmem:[#allocation2 + $0x8] sm:$0xff]
  %v355 = vld [vmem:[#allocation2 + $0x10] sm:$0xff]
  %v356 = vld [vmem:[#allocation2 + $0x18] sm:$0xff]
  %v357 = vld [vmem:[#allocation2 + $0x20] sm:$0xff]
  %v358 = vld [vmem:[#allocation2 + $0x28] sm:$0xff]
  %v359 = vld [vmem:[#allocation2 + $0x30] sm:$0xff]
  %v360 = vld [vmem:[#allocation2 + $0x38] sm:$0xff]
  %v361 = vld [vmem:[#allocation2 + $0x40] sm:$0xff]
  %v362 = vld [vmem:[#allocation2 + $0x48] sm:$0xff]
  %v363 = vld [vmem:[#allocation2 + $0x50] sm:$0xff]
  %v364 = vld [vmem:[#allocation2 + $0x58] sm:$0xff]
  %v365 = vld [vmem:[#allocation2 + $0x60] sm:$0xff]
  %v366 = vld [vmem:[#allocation2 + $0x68] sm:$0xff]
  %v367 = vld [vmem:[#allocation2 + $0x70] sm:$0xff]
  %v368 = vld [vmem:[#allocation2 + $0x78] sm:$0xff]
  %v369 = vld [vmem:[#allocation2 + $0x80] sm:$0xff]
  %v370 = vld [vmem:[#allocation2 + $0x88] sm:$0xff]
  %v371 = vld [vmem:[#allocation2 + $0x90] sm:$0xff]
  %v372 = vld [vmem:[#allocation2 + $0x98] sm:$0xff]
  %v373 = vld [vmem:[#allocation2 + $0xa0] sm:$0xff]
  %v374 = vld [vmem:[#allocation2 + $0xa8] sm:$0xff]
  %v375 = vld [vmem:[#allocation2 + $0xb0] sm:$0xff]
  %v376 = vld [vmem:[#allocation2 + $0xb8] sm:$0xff]
  %v377 = vld [vmem:[#allocation2 + $0xc0] sm:$0xff]
  %v378 = vld [vmem:[#allocation2 + $0xc8] sm:$0xff]
  %v379 = vld [vmem:[#allocation2 + $0xd0] sm:$0xff]
  %v380 = vld [vmem:[#allocation2 + $0xd8] sm:$0xff]
  %v381 = vadd.f32 %v353, %v354
  %v382 = vadd.f32 %v381, %v355
  %v383 = vadd.f32 %v382, %v356
  %v384 = vadd.f32 %v383, %v357
  %v385 = vadd.f32 %v384, %v358
  %v386 = vsel %vm330, %v359, 0.0
  %v387 = vadd.f32 %v385, %v386
  %388 = vadd.xlane.f32.xlu0 %v387
  %v389 = vpop.xlane.xlu0 %388
  %v390 = vadd.f32 %v360, %v361
  %v391 = vadd.f32 %v390, %v362
  %v392 = vadd.f32 %v391, %v363
  %v393 = vadd.f32 %v392, %v364
  %v394 = vadd.f32 %v393, %v365
  %v395 = vsel %vm330, %v366, 0.0
  %v396 = vadd.f32 %v394, %v395
  %397 = vadd.xlane.f32.xlu0 %v396
  %v398 = vpop.xlane.xlu0 %397
  %v399 = vadd.f32 %v367, %v368
  %v400 = vadd.f32 %v399, %v369
  %v401 = vadd.f32 %v400, %v370
  %v402 = vadd.f32 %v401, %v371
  %v403 = vadd.f32 %v402, %v372
  %v404 = vsel %vm330, %v373, 0.0
  %v405 = vadd.f32 %v403, %v404
  %406 = vadd.xlane.f32.xlu0 %v405
  %v407 = vpop.xlane.xlu0 %406
  %v408 = vadd.f32 %v374, %v375
  %v409 = vadd.f32 %v408, %v376
  %v410 = vadd.f32 %v409, %v377
  %v411 = vadd.f32 %v410, %v378
  %v412 = vadd.f32 %v411, %v379
  %v413 = vsel %vm330, %v380, 0.0
  %v414 = vadd.f32 %v412, %v413
  %415 = vadd.xlane.f32.xlu0 %v414
  %v416 = vpop.xlane.xlu0 %415
  %v417 = vadd.f32 %v389, 0.0
  %v418 = vadd.f32 %v398, 0.0
  %v419 = vadd.f32 %v407, 0.0
  %v420 = vadd.f32 %v416, 0.0
  %v421 = vmul.f32 %v417, 0.0012755102
  %v422 = vmul.f32 %v418, 0.0012755102
  %v423 = vmul.f32 %v419, 0.0012755102
  %v424 = vmul.f32 %v420, 0.0012755102
  %v425 = vsub.f32 %v353, %v421
  %v426 = vsub.f32 %v354, %v421
  %v427 = vsub.f32 %v355, %v421
  %v428 = vsub.f32 %v356, %v421
  %v429 = vsub.f32 %v357, %v421
  %v430 = vsub.f32 %v358, %v421
  %v431 = vsub.f32 %v359, %v421
  %v432 = vsub.f32 %v360, %v422
  %v433 = vsub.f32 %v361, %v422
  %v434 = vsub.f32 %v362, %v422
  %v435 = vsub.f32 %v363, %v422
  %v436 = vsub.f32 %v364, %v422
  %v437 = vsub.f32 %v365, %v422
  %v438 = vsub.f32 %v366, %v422
  %v439 = vsub.f32 %v367, %v423
  %v440 = vsub.f32 %v368, %v423
  %v441 = vsub.f32 %v369, %v423
  %v442 = vsub.f32 %v370, %v423
  %v443 = vsub.f32 %v371, %v423
  %v444 = vsub.f32 %v372, %v423
  %v445 = vsub.f32 %v373, %v423
  %v446 = vsub.f32 %v374, %v424
  %v447 = vsub.f32 %v375, %v424
  %v448 = vsub.f32 %v376, %v424
  %v449 = vsub.f32 %v377, %v424
  %v450 = vsub.f32 %v378, %v424
  %v451 = vsub.f32 %v379, %v424
  %v452 = vsub.f32 %v380, %v424
  %v453 = vmul.f32 %v425, %v425
  %v454 = vmul.f32 %v426, %v426
  %v455 = vmul.f32 %v427, %v427
  %v456 = vmul.f32 %v428, %v428
  %v457 = vmul.f32 %v429, %v429
  %v458 = vmul.f32 %v430, %v430
  %v459 = vmul.f32 %v431, %v431
  %v460 = vmul.f32 %v432, %v432
  %v461 = vmul.f32 %v433, %v433
  %v462 = vmul.f32 %v434, %v434
  %v463 = vmul.f32 %v435, %v435
  %v464 = vmul.f32 %v436, %v436
  %v465 = vmul.f32 %v437, %v437
  %v466 = vmul.f32 %v438, %v438
  %v467 = vmul.f32 %v439, %v439
  %v468 = vmul.f32 %v440, %v440
  %v469 = vmul.f32 %v441, %v441
  %v470 = vmul.f32 %v442, %v442
  %v471 = vmul.f32 %v443, %v443
  %v472 = vmul.f32 %v444, %v444
  %v473 = vmul.f32 %v445, %v445
  %v474 = vmul.f32 %v446, %v446
  %v475 = vmul.f32 %v447, %v447
  %v476 = vmul.f32 %v448, %v448
  %v477 = vmul.f32 %v449, %v449
  %v478 = vmul.f32 %v450, %v450
  %v479 = vmul.f32 %v451, %v451
  %v480 = vmul.f32 %v452, %v452
  %v481 = vadd.f32 %v453, %v454
  %v482 = vadd.f32 %v481, %v455
  %v483 = vadd.f32 %v482, %v456
  %v484 = vadd.f32 %v483, %v457
  %v485 = vadd.f32 %v484, %v458
  %v486 = vsel %vm330, %v459, 0.0
  %v487 = vadd.f32 %v485, %v486
  %488 = vadd.xlane.f32.xlu0 %v487
  %v489 = vpop.xlane.xlu0 %488
  %v490 = vadd.f32 %v460, %v461
  %v491 = vadd.f32 %v490, %v462
  %v492 = vadd.f32 %v491, %v463
  %v493 = vadd.f32 %v492, %v464
  %v494 = vadd.f32 %v493, %v465
  %v495 = vsel %vm330, %v466, 0.0
  %v496 = vadd.f32 %v494, %v495
  %497 = vadd.xlane.f32.xlu0 %v496
  %v498 = vpop.xlane.xlu0 %497
  %v499 = vadd.f32 %v467, %v468
  %v500 = vadd.f32 %v499, %v469
  %v501 = vadd.f32 %v500, %v470
  %v502 = vadd.f32 %v501, %v471
  %v503 = vadd.f32 %v502, %v472
  %v504 = vsel %vm330, %v473, 0.0
  %v505 = vadd.f32 %v503, %v504
  %506 = vadd.xlane.f32.xlu0 %v505
  %v507 = vpop.xlane.xlu0 %506
  %v508 = vadd.f32 %v474, %v475
  %v509 = vadd.f32 %v508, %v476
  %v510 = vadd.f32 %v509, %v477
  %v511 = vadd.f32 %v510, %v478
  %v512 = vadd.f32 %v511, %v479
  %v513 = vsel %vm330, %v480, 0.0
  %v514 = vadd.f32 %v512, %v513
  %515 = vadd.xlane.f32.xlu0 %v514
  %v516 = vpop.xlane.xlu0 %515
  %v517 = vadd.f32 %v489, 0.0
  %v518 = vadd.f32 %v498, 0.0
  %v519 = vadd.f32 %v507, 0.0
  %v520 = vadd.f32 %v516, 0.0
  %v521 = vmul.f32 %v517, 0.0012755102
  %v522 = vmul.f32 %v518, 0.0012755102
  %v523 = vmul.f32 %v519, 0.0012755102
  %v524 = vmul.f32 %v520, 0.0012755102
  %v525 = vld [vmem:[%s2] sm:$0xff]
  %v526 = vld [vmem:[%s2 + $0x8] sm:$0xff]
  %v527 = vld [vmem:[%s2 + $0x10] sm:$0xff]
  %v528 = vld [vmem:[%s2 + $0x18] sm:$0xff]
  %v529 = vadd.f32 %v521, 1e-05
  %v530 = vadd.f32 %v522, 1e-05
  %v531 = vadd.f32 %v523, 1e-05
  %v532 = vadd.f32 %v524, 1e-05
  %v533 = vrsqrt.pop %v529
  %v534 = vmul.f32 %v533, %v529
  %v535 = vmul.f32 %v534, %v533
  %v536 = vmul.f32 0.5, %v535
  %v537 = vsub.f32 1.5, %v536
  %v538 = vmul.f32 %v533, %v537
  %vm539 = vweird.f32 %v529
  %vm540 = vweird.f32 %v533
  %vm541 = vmor %vm539, %vm540
  %v542 = vsel %vm541, %v533, %v538
  %v543 = vrsqrt.pop %v530
  %v544 = vmul.f32 %v543, %v530
  %v545 = vmul.f32 %v544, %v543
  %v546 = vmul.f32 0.5, %v545
  %v547 = vsub.f32 1.5, %v546
  %v548 = vmul.f32 %v543, %v547
  %vm549 = vweird.f32 %v530
  %vm550 = vweird.f32 %v543
  %vm551 = vmor %vm549, %vm550
  %v552 = vsel %vm551, %v543, %v548
  %v553 = vrsqrt.pop %v531
  %v554 = vmul.f32 %v553, %v531
  %v555 = vmul.f32 %v554, %v553
  %v556 = vmul.f32 0.5, %v555
  %v557 = vsub.f32 1.5, %v556
  %v558 = vmul.f32 %v553, %v557
  %vm559 = vweird.f32 %v531
  %vm560 = vweird.f32 %v553
  %vm561 = vmor %vm559, %vm560
  %v562 = vsel %vm561, %v553, %v558
  %v563 = vrsqrt.pop %v532
  %v564 = vmul.f32 %v563, %v532
  %v565 = vmul.f32 %v564, %v563
  %v566 = vmul.f32 0.5, %v565
  %v567 = vsub.f32 1.5, %v566
  %v568 = vmul.f32 %v563, %v567
  %vm569 = vweird.f32 %v532
  %vm570 = vweird.f32 %v563
  %vm571 = vmor %vm569, %vm570
  %v572 = vsel %vm571, %v563, %v568
  %v573 = vmul.f32 %v525, %v542
  %v574 = vmul.f32 %v526, %v552
  %v575 = vmul.f32 %v527, %v562
  %v576 = vmul.f32 %v528, %v572
  %v577 = vld [vmem:[%s3] sm:$0xff]
  %v578 = vld [vmem:[%s3 + $0x8] sm:$0xff]
  %v579 = vld [vmem:[%s3 + $0x10] sm:$0xff]
  %v580 = vld [vmem:[%s3 + $0x18] sm:$0xff]
  %v581 = vmul.f32 %v421, %v573
  %v582 = vmul.f32 %v422, %v574
  %v583 = vmul.f32 %v423, %v575
  %v584 = vmul.f32 %v424, %v576
  %v585 = vsub.f32 %v577, %v581
  %v586 = vsub.f32 %v578, %v582
  %v587 = vsub.f32 %v579, %v583
  %v588 = vsub.f32 %v580, %v584
  %590 = vset.pattern.permute.xlu0 0
  %591 = vperm.xlu0 %590, %v573
  %v592 = vpop.permute.xlu0 %591
  %595 = vset.pattern.permute.xlu0 0
  %596 = vperm.xlu0 %595, %v574
  %v597 = vpop.permute.xlu0 %596
  %600 = vset.pattern.permute.xlu0 0
  %601 = vperm.xlu0 %600, %v575
  %v602 = vpop.permute.xlu0 %601
  %605 = vset.pattern.permute.xlu0 0
  %606 = vperm.xlu0 %605, %v576
  %v607 = vpop.permute.xlu0 %606
  %v609 = vmul.f32 %v353, %v592
  %v610 = vmul.f32 %v354, %v592
  %v611 = vmul.f32 %v355, %v592
  %v612 = vmul.f32 %v356, %v592
  %v613 = vmul.f32 %v357, %v592
  %v614 = vmul.f32 %v358, %v592
  %v615 = vmul.f32 %v359, %v592
  %v616 = vmul.f32 %v360, %v597
  %v617 = vmul.f32 %v361, %v597
  %v618 = vmul.f32 %v362, %v597
  %v619 = vmul.f32 %v363, %v597
  %v620 = vmul.f32 %v364, %v597
  %v621 = vmul.f32 %v365, %v597
  %v622 = vmul.f32 %v366, %v597
  %v623 = vmul.f32 %v367, %v602
  %v624 = vmul.f32 %v368, %v602
  %v625 = vmul.f32 %v369, %v602
  %v626 = vmul.f32 %v370, %v602
  %v627 = vmul.f32 %v371, %v602
  %v628 = vmul.f32 %v372, %v602
  %v629 = vmul.f32 %v373, %v602
  %v630 = vmul.f32 %v374, %v607
  %v631 = vmul.f32 %v375, %v607
  %v632 = vmul.f32 %v376, %v607
  %v633 = vmul.f32 %v377, %v607
  %v634 = vmul.f32 %v378, %v607
  %v635 = vmul.f32 %v379, %v607
  %v636 = vmul.f32 %v380, %v607
  %638 = vset.pattern.permute.xlu0 0
  %639 = vperm.xlu0 %638, %v585
  %v640 = vpop.permute.xlu0 %639
  %643 = vset.pattern.permute.xlu0 0
  %644 = vperm.xlu0 %643, %v586
  %v645 = vpop.permute.xlu0 %644
  %648 = vset.pattern.permute.xlu0 0
  %649 = vperm.xlu0 %648, %v587
  %v650 = vpop.permute.xlu0 %649
  %653 = vset.pattern.permute.xlu0 0
  %654 = vperm.xlu0 %653, %v588
  %v655 = vpop.permute.xlu0 %654
  %v657 = vadd.f32 %v609, %v640
  %v658 = vadd.f32 %v610, %v640
  %v659 = vadd.f32 %v611, %v640
  %v660 = vadd.f32 %v612, %v640
  %v661 = vadd.f32 %v613, %v640
  %v662 = vadd.f32 %v614, %v640
  %v663 = vadd.f32 %v615, %v640
  %v664 = vadd.f32 %v616, %v645
  %v665 = vadd.f32 %v617, %v645
  %v666 = vadd.f32 %v618, %v645
  %v667 = vadd.f32 %v619, %v645
  %v668 = vadd.f32 %v620, %v645
  %v669 = vadd.f32 %v621, %v645
  %v670 = vadd.f32 %v622, %v645
  %v671 = vadd.f32 %v623, %v650
  %v672 = vadd.f32 %v624, %v650
  %v673 = vadd.f32 %v625, %v650
  %v674 = vadd.f32 %v626, %v650
  %v675 = vadd.f32 %v627, %v650
  %v676 = vadd.f32 %v628, %v650
  %v677 = vadd.f32 %v629, %v650
  %v678 = vadd.f32 %v630, %v655
  %v679 = vadd.f32 %v631, %v655
  %v680 = vadd.f32 %v632, %v655
  %v681 = vadd.f32 %v633, %v655
  %v682 = vadd.f32 %v634, %v655
  %v683 = vadd.f32 %v635, %v655
  %v684 = vadd.f32 %v636, %v655
  %v685 = vld [vmem:[%s4] sm:$0xff]
  %v686 = vld [vmem:[%s4 + $0x8] sm:$0xff]
  %v687 = vld [vmem:[%s4 + $0x10] sm:$0xff]
  %v688 = vld [vmem:[%s4 + $0x18] sm:$0xff]
  %v689 = vld [vmem:[%s4 + $0x20] sm:$0xff]
  %v690 = vld [vmem:[%s4 + $0x28] sm:$0xff]
  %v691 = vld [vmem:[%s4 + $0x30] sm:$0xff]
  %v692 = vld [vmem:[%s4 + $0x38] sm:$0xff]
  %v693 = vld [vmem:[%s4 + $0x40] sm:$0xff]
  %v694 = vld [vmem:[%s4 + $0x48] sm:$0xff]
  %v695 = vld [vmem:[%s4 + $0x50] sm:$0xff]
  %v696 = vld [vmem:[%s4 + $0x58] sm:$0xff]
  %v697 = vld [vmem:[%s4 + $0x60] sm:$0xff]
  %v698 = vld [vmem:[%s4 + $0x68] sm:$0xff]
  %v699 = vld [vmem:[%s4 + $0x70] sm:$0xff]
  %v700 = vld [vmem:[%s4 + $0x78] sm:$0xff]
  %v701 = vld [vmem:[%s4 + $0x80] sm:$0xff]
  %v702 = vld [vmem:[%s4 + $0x88] sm:$0xff]
  %v703 = vld [vmem:[%s4 + $0x90] sm:$0xff]
  %v704 = vld [vmem:[%s4 + $0x98] sm:$0xff]
  %v705 = vld [vmem:[%s4 + $0xa0] sm:$0xff]
  %v706 = vld [vmem:[%s4 + $0xa8] sm:$0xff]
  %v707 = vld [vmem:[%s4 + $0xb0] sm:$0xff]
  %v708 = vld [vmem:[%s4 + $0xb8] sm:$0xff]
  %v709 = vld [vmem:[%s4 + $0xc0] sm:$0xff]
  %v710 = vld [vmem:[%s4 + $0xc8] sm:$0xff]
  %v711 = vld [vmem:[%s4 + $0xd0] sm:$0xff]
  %v712 = vld [vmem:[%s4 + $0xd8] sm:$0xff]
  %v713 = vadd.f32 %v657, %v685
  %v714 = vadd.f32 %v658, %v686
  %v715 = vadd.f32 %v659, %v687
  %v716 = vadd.f32 %v660, %v688
  %v717 = vadd.f32 %v661, %v689
  %v718 = vadd.f32 %v662, %v690
  %v719 = vadd.f32 %v663, %v691
  %v720 = vadd.f32 %v664, %v692
  %v721 = vadd.f32 %v665, %v693
  %v722 = vadd.f32 %v666, %v694
  %v723 = vadd.f32 %v667, %v695
  %v724 = vadd.f32 %v668, %v696
  %v725 = vadd.f32 %v669, %v697
  %v726 = vadd.f32 %v670, %v698
  %v727 = vadd.f32 %v671, %v699
  %v728 = vadd.f32 %v672, %v700
  %v729 = vadd.f32 %v673, %v701
  %v730 = vadd.f32 %v674, %v702
  %v731 = vadd.f32 %v675, %v703
  %v732 = vadd.f32 %v676, %v704
  %v733 = vadd.f32 %v677, %v705
  %v734 = vadd.f32 %v678, %v706
  %v735 = vadd.f32 %v679, %v707
  %v736 = vadd.f32 %v680, %v708
  %v737 = vadd.f32 %v681, %v709
  %v738 = vadd.f32 %v682, %v710
  %v739 = vadd.f32 %v683, %v711
  %v740 = vadd.f32 %v684, %v712
  %741 = vst [vmem:[%s5] sm:$0xff] %v713
  %742 = vst [vmem:[%s5 + $0x8] sm:$0xff] %v714
  %743 = vst [vmem:[%s5 + $0x10] sm:$0xff] %v715
  %744 = vst [vmem:[%s5 + $0x18] sm:$0xff] %v716
  %745 = vst [vmem:[%s5 + $0x20] sm:$0xff] %v717
  %746 = vst [vmem:[%s5 + $0x28] sm:$0xff] %v718
  %747 = vst.msk [vmem:[%s5 + $0x30] sm:$0xff] %vm330, %v719
  %748 = vst [vmem:[%s5 + $0x38] sm:$0xff] %v720
  %749 = vst [vmem:[%s5 + $0x40] sm:$0xff] %v721
  %750 = vst [vmem:[%s5 + $0x48] sm:$0xff] %v722
  %751 = vst [vmem:[%s5 + $0x50] sm:$0xff] %v723
  %752 = vst [vmem:[%s5 + $0x58] sm:$0xff] %v724
  %753 = vst [vmem:[%s5 + $0x60] sm:$0xff] %v725
  %754 = vst.msk [vmem:[%s5 + $0x68] sm:$0xff] %vm330, %v726
  %755 = vst [vmem:[%s5 + $0x70] sm:$0xff] %v727
  %756 = vst [vmem:[%s5 + $0x78] sm:$0xff] %v728
  %757 = vst [vmem:[%s5 + $0x80] sm:$0xff] %v729
  %758 = vst [vmem:[%s5 + $0x88] sm:$0xff] %v730
  %759 = vst [vmem:[%s5 + $0x90] sm:$0xff] %v731
  %760 = vst [vmem:[%s5 + $0x98] sm:$0xff] %v732
  %761 = vst.msk [vmem:[%s5 + $0xa0] sm:$0xff] %vm330, %v733
  %762 = vst [vmem:[%s5 + $0xa8] sm:$0xff] %v734
  %763 = vst [vmem:[%s5 + $0xb0] sm:$0xff] %v735
  %764 = vst [vmem:[%s5 + $0xb8] sm:$0xff] %v736
  %765 = vst [vmem:[%s5 + $0xc0] sm:$0xff] %v737
  %766 = vst [vmem:[%s5 + $0xc8] sm:$0xff] %v738
  %767 = vst [vmem:[%s5 + $0xd0] sm:$0xff] %v739
  %768 = vst.msk [vmem:[%s5 + $0xd8] sm:$0xff] %vm330, %v740
  // Predicated region
  $region22: #{conv_bn_add.1} parent=0 // pred_check
    _
  $region23: #{conv_bn_add.1} parent=0 // pred_check_branch
    %770 = sbr.rel (0) target = $region25
  $region24: #{conv_bn_add.1} parent=0 // pred_region
    _
  $region25: #{conv_bn_add.1} parent=0 // pred_fallthru
    _
  // Predicated region
  $region26: #{conv_bn_add.1} parent=0 // pred_check
    _
  $region27: #{conv_bn_add.1} parent=0 // pred_check_branch
    %772 = sbr.rel (0) target = $region29
  $region28: #{conv_bn_add.1} parent=0 // pred_region
    _
  $region29: #{conv_bn_add.1} parent=0 // pred_fallthru
    _

</llo_original>
